<compile_context>
chip_gen: v6e
topology: v6e:2x2x1
jax: 0.10.0
libtpu: 0.0.40
codegen_flags: <defaults>
</compile_context>

<pallas_src>
import jax
import jax.numpy as jnp
from jax.experimental import pallas as pl
from jax.experimental.pallas import tpu as pltpu

_LANE = 128

# Rows of output per grid step.  VMEM budget at TN=2048, emb=128 (f32):
#   out  double-buffer: 2 * 2048 * 128 * 4 B = 2 MiB
#   idx  double-buffer: 2 * (2048/128) * 128 * 4 B = 16 KiB  (lane-dense)
#   table (resident)  : 32 * 128 * 4 B = 16 KiB
# Safe well under v7x's 32 MiB scoped VMEM; on v5e/v6e (128 MiB) this can be
# raised to 8192 to further amortize the ~0.35 us per-grid-step overhead.
_TARGET_ROWS_PER_TILE = 2048


def _round_up(x, m):
    return (x + m - 1) // m * m


def _embedding_kernel(idx_ref, table_ref, out_ref):
    # idx_ref:   (R, 128)   int32   lane-dense indices (128 rows per chunk)
    # table_ref: (L, E)     float32 whole embedding table (VMEM-resident)
    # out_ref:   (R*128, E) float32
    num_labels = table_ref.shape[0]
    r_chunks = idx_ref.shape[0]

    table = table_ref[...]                                           # (L, E)
    idx = idx_ref[...]                                               # (R, 128)
    # labels[l, j] = l  (iota along the sublane axis)
    labels = jax.lax.broadcasted_iota(jnp.int32, (num_labels, _LANE), 0)

    # Static unroll over 128-row chunks (R <= 16 at the default tile size).
    for r in range(r_chunks):
        idx_row = idx[r:r + 1, :]                                    # (1, 128)
        # Transposed one-hot: rows in lanes, labels in sublanes (VPU compare,
        # no relayout of the indices needed).
        one_hot_t = (labels == idx_row).astype(jnp.float32)          # (L, 128)
        # Small 2-D transpose (XLU) moves rows into sublanes for the MXU.
        one_hot = one_hot_t.T                                        # (128, L)
        chunk = jnp.dot(one_hot, table,
                        preferred_element_type=jnp.float32)          # (128, E)
        out_ref[pl.ds(r * _LANE, _LANE), :] = chunk.astype(out_ref.dtype)


def speech_embedding_forward(mask_idx, table):
    """Pallas equivalent of SPEECH_EMBEDDING.forward.

    mask_idx: integer array of indices, arbitrary leading shape (e.g. (B, K))
    table:    (num_labels, emb_size) float32 embedding weight
    returns:  mask_idx.shape + (emb_size,) float32
    """
    orig_shape = mask_idx.shape
    idx_flat = mask_idx.reshape(-1).astype(jnp.int32)
    n = idx_flat.shape[0]
    num_labels, emb = table.shape

    # Tile the flattened row dimension; adapt down for tiny N.
    tn = min(_TARGET_ROWS_PER_TILE, _round_up(n, _LANE))
    n_pad = _round_up(n, tn)
    r_chunks = tn // _LANE
    grid = (n_pad // tn,)

    # Pad with index 0 (a valid row); padded rows are sliced off below.
    idx_padded = jnp.pad(idx_flat, (0, n_pad - n))
    idx_2d = idx_padded.reshape(n_pad // _LANE, _LANE)   # lane-dense layout

    out = pl.pallas_call(
        _embedding_kernel,
        out_shape=jax.ShapeDtypeStruct((n_pad, emb), table.dtype),
        grid=grid,
        in_specs=[
            # Indices: tiled along the row axis, lane-dense.
            pl.BlockSpec((r_chunks, _LANE), lambda i: (i, 0)),
            # Table: constant block index -> stays resident in VMEM.
            pl.BlockSpec((num_labels, emb), lambda i: (0, 0)),
        ],
        out_specs=pl.BlockSpec((tn, emb), lambda i: (i, 0)),
        compiler_params=pltpu.CompilerParams(
            # Independent row tiles: shard across v7x's 2 TensorCores.
            dimension_semantics=("parallel",)),
    )(idx_2d, table)

    return out[:n].reshape(orig_shape + (emb,))


if __name__ == "__main__":
    # Module hyper-parameters (small, consistent with the module's __init__).
    num_labels = 32          # num_labels
    embedding_size = 128     # embedding_size
    max_num_channel = 4      # max_num_channel (stored but unused in forward)

    key = jax.random.PRNGKey(0)
    k_tab, k_idx = jax.random.split(key)

    # Deterministic parameter init: nn.Embedding default is N(0, 1).
    table = jax.random.normal(k_tab, (num_labels, embedding_size),
                              dtype=jnp.float32)

    # Example mask_idx: (batch=2, k=4) integer indices.
    mask_idx = jax.random.randint(k_idx, (2, max_num_channel), 0, num_labels,
                                  dtype=jnp.int32)

    out = speech_embedding_forward(mask_idx, table)
    out = jax.block_until_ready(out)

    # Reference check against a plain JAX gather (same semantics as nn.Embedding).
    ref = jnp.take(table, mask_idx, axis=0)
    assert out.shape == (2, max_num_channel, embedding_size)
    assert jnp.allclose(out, ref, atol=1e-5, rtol=1e-5)

    print("KERNEL_OK")
</pallas_src>

<mosaic_0001>
module attributes {stable_mosaic.version = 11 : i64} {
  func.func @_embedding_kernel(%arg0: i32, %arg1: memref<1x128xi32, #tpu.memory_space<vmem>>, %arg2: memref<32x128xf32, #tpu.memory_space<vmem>>, %arg3: memref<128x128xf32, #tpu.memory_space<vmem>>) attributes {dimension_semantics = [#tpu.dimension_semantics<parallel>], iteration_bounds = array<i64: 1>, scalar_prefetch = 0 : i64, scratch_operands = 0 : i64, tpu.core_type = #tpu.core_type<tc>, window_params = [{transform_indices = @transform_0, window_bounds = array<i64: 1, 128>}, {pipeline_mode = #tpu.pipeline_mode<synchronous>, transform_indices = @transform_1, window_bounds = array<i64: 32, 128>}, {transform_indices = @transform_2, window_bounds = array<i64: 128, 128>}]} {
    %c0 = arith.constant 0 : index
    %c0_0 = arith.constant 0 : index
    %0 = vector.load %arg2[%c0, %c0_0] : memref<32x128xf32, #tpu.memory_space<vmem>>, vector<32x128xf32>
    %c0_1 = arith.constant 0 : index
    %c0_2 = arith.constant 0 : index
    %1 = vector.load %arg1[%c0_1, %c0_2] : memref<1x128xi32, #tpu.memory_space<vmem>>, vector<1x128xi32>
    %2 = tpu.iota {dimensions = array<i32: 0>} : vector<32x128xi32>
    %3 = vector.broadcast %1 : vector<1x128xi32> to vector<32x128xi32>
    %4 = arith.cmpi eq, %2, %3 : vector<32x128xi32>
    %5 = arith.extui %4 : vector<32x128xi1> to vector<32x128xi32>
    %6 = arith.sitofp %5 : vector<32x128xi32> to vector<32x128xf32>
    %7 = tpu.transpose %6, [1, 0] : vector<32x128xf32> -> vector<128x32xf32>
    %cst = arith.constant dense<0.000000e+00> : vector<128x128xf32>
    %8 = tpu.matmul %7, %0, %cst {dimension_numbers = #tpu.dot_dimension_numbers<[1], [0], [0], [1], [0, 0, 1, 1], [], []>} : vector<128x32xf32>, vector<32x128xf32>, vector<128x128xf32> -> vector<128x128xf32>
    %c0_3 = arith.constant 0 : index
    %c0_4 = arith.constant 0 : index
    %9 = vector.load %arg3[%c0_3, %c0_4] : memref<128x128xf32, #tpu.memory_space<vmem>>, vector<128x128xf32>
    tpu.vector_store %arg3[%c0_3, %c0_4], %8 {strides = array<i32>} : memref<128x128xf32, #tpu.memory_space<vmem>>, vector<128x128xf32>,
    return
  }
  func.func @transform_0(%arg0: i32) -> (i32, i32) {
    %c0_i32 = arith.constant 0 : i32
    %c0_i32_0 = arith.constant 0 : i32
    return %arg0, %c0_i32 : i32, i32
  }
  func.func @transform_1(%arg0: i32) -> (i32, i32) {
    %c0_i32 = arith.constant 0 : i32
    %c0_i32_0 = arith.constant 0 : i32
    %c0_i32_1 = arith.constant 0 : i32
    return %c0_i32, %c0_i32_0 : i32, i32
  }
  func.func @transform_2(%arg0: i32) -> (i32, i32) {
    %c0_i32 = arith.constant 0 : i32
    %c0_i32_0 = arith.constant 0 : i32
    return %arg0, %c0_i32 : i32, i32
  }
}

</mosaic_0001>

<llo_original>
// kernel: tpu_custom_call.1
$region0: #{tpu_custom_call.1}
  #allocation0 [shape = 'u32[]', space=smem, size = 0x4, offset = 0x4, fixed_abs, tag = 'smem constant byte address 0x4 - core index']
  #allocation1 [shape = 'u32[144,128]{1,0:T(1,128)}', space=vmem, size = 0x12000, scoped, tag = 'internal scratch']
  %s0 = inlined_call_operand.hbm [shape: s32[1,128], index: 0, kind: input, shape index: {}]
  %s1 = inlined_call_operand.hbm [shape: f32[32,128], index: 1, kind: input, shape index: {}]
  %s2 = inlined_call_operand.hbm [shape: f32[128,128], index: 2, kind: output, shape index: {}]
  %s3 = sld [smem:[#allocation0]]
  $region26: #{tpu_custom_call.1} parent=0
    _
  %s5 = ssub.s32 1, %s3
  %s6 = scalar_select 0, %s5, %s3
  $region1: #{tpu_custom_call.1} parent=0
    #allocation2 [shape = 'u8[512]{0}', space=vmem, size = 0x400, scoped, tag = 'input window, operand 0, single buffered']
    #allocation3 [shape = 's32[1]{0}', space=sflag, size = 0x4, scoped, tag = 'scoped memory for tpu_custom_call.1']
    #allocation4 [shape = 's32[1]{0}', space=sflag, size = 0x4, scoped, tag = 'scoped memory for tpu_custom_call.1']
    #allocation5 [shape = 'u8[16384]{0}', space=vmem, size = 0x4000, scoped, tag = 'input window, operand 1, single buffered']
    #allocation6 [shape = 's32[1]{0}', space=sflag, size = 0x4, scoped, tag = 'scoped memory for tpu_custom_call.1']
    #allocation7 [shape = 'u8[65536]{0}', space=vmem, size = 0x10000, scoped, tag = 'output window, operand 0, single buffered']
    %7 = vsyncpa [#allocation3], 0
    %8 = vsyncpa [#allocation6], 0
    %9 = vsyncpa [#allocation4], 0
    // Predicated region
    $region2: #{tpu_custom_call.1} parent=1 // pred_check
      _
    $region3: #{tpu_custom_call.1} parent=1 // pred_check_branch
      %11 = sbr.rel (0) target = $region5
    $region4: #{tpu_custom_call.1} parent=1 // pred_region
      %s13 = ssub.s32 16, 16
      %14 = vsyncadd [#allocation3], %s13
      %s16 = sshll.u32 [#allocation2], 4
      %s17 = int_to_ptr.vmem [resolvable:$true] %s16
      %19 = dma.hbm_to_vmem [thread:$0]  %s0, 16, %s17, [#allocation3]
    $region5: #{tpu_custom_call.1} parent=1 // pred_fallthru
      _
    // Predicated region
    $region6: #{tpu_custom_call.1} parent=1 // pred_check
      _
    $region7: #{tpu_custom_call.1} parent=1 // pred_check_branch
      %21 = sbr.rel (0) target = $region9
    $region8: #{tpu_custom_call.1} parent=1 // pred_region
      %s23 = ssub.s32 512, 512
      %24 = vsyncadd [#allocation6], %s23
      %s25 = sshll.u32 [#allocation5], 4
      %s26 = int_to_ptr.vmem [resolvable:$true] %s25
      %31 = dma.hbm_to_vmem [thread:$0]  %s1, 512, %s26, [#allocation6], 128, 128, 8
    $region9: #{tpu_custom_call.1} parent=1 // pred_fallthru
      _
    // Predicated region
    $region10: #{tpu_custom_call.1} parent=1 // pred_check
      _
    $region11: #{tpu_custom_call.1} parent=1 // pred_check_branch
      %33 = sbr.rel (0) target = $region13
    $region12: #{tpu_custom_call.1} parent=1 // pred_region
      %34 = dma.done [#allocation3], 16
    $region13: #{tpu_custom_call.1} parent=1 // pred_fallthru
      _
    // Predicated region
    $region14: #{tpu_custom_call.1} parent=1 // pred_check
      _
    $region15: #{tpu_custom_call.1} parent=1 // pred_check_branch
      %36 = sbr.rel (0) target = $region17
    $region16: #{tpu_custom_call.1} parent=1 // pred_region
      %37 = dma.done [#allocation6], 512
    $region17: #{tpu_custom_call.1} parent=1 // pred_fallthru
      _
    %v38 = vld [vmem:[#allocation5] sm:$0xff]
    %v39 = vld [vmem:[#allocation5 + $0x8] sm:$0xff]
    %v40 = vld [vmem:[#allocation5 + $0x10] sm:$0xff]
    %v41 = vld [vmem:[#allocation5 + $0x18] sm:$0xff]
    %v42 = vld [vmem:[#allocation2] sm:$0x1]
    %v43 = vlaneseq
    %v44 = vshrl.u32 %v43, 7
    %v45 = vadd.s32 %v44, 8
    %v46 = vadd.s32 %v44, 16
    %v47 = vadd.s32 %v44, 24
    %v48 = vlaneseq
    %v49 = vshrl.u32 %v48, 7
    %v50 = vsub.s32 0, %v49
    %v51 = vrot.slane %v42, %v50
    %vm52 = vcmp.eq.s32.totalorder %v44, %v51
    %vm53 = vcmp.eq.s32.totalorder %v45, %v51
    %vm54 = vcmp.eq.s32.totalorder %v46, %v51
    %vm55 = vcmp.eq.s32.totalorder %v47, %v51
    %v56 = vsel %vm52, 1, 0
    %v57 = vsel %vm53, 1, 0
    %v58 = vsel %vm54, 1, 0
    %v59 = vsel %vm55, 1, 0
    %v60 = vcvt.s32.f32 %v56
    %v61 = vcvt.s32.f32 %v57
    %v62 = vcvt.s32.f32 %v58
    %v63 = vcvt.s32.f32 %v59
    %64 = vxpose.xlu0.b32.start [1/16] %v60, 128
    %65 = vxpose.xlu0.b32.cont [2/16] %v61, 128
    %66 = vxpose.xlu0.b32.cont [3/16] %v62, 128
    %67 = vxpose.xlu0.b32.cont [4/16] %v63, 128
    %68 = vxpose.xlu0.b32.cont [5/16] 0.0, 128
    %69 = vxpose.xlu0.b32.cont [6/16] 0.0, 128
    %70 = vxpose.xlu0.b32.cont [7/16] 0.0, 128
    %71 = vxpose.xlu0.b32.cont [8/16] 0.0, 128
    %72 = vxpose.xlu0.b32.cont [9/16] 0.0, 128
    %73 = vxpose.xlu0.b32.cont [10/16] 0.0, 128
    %74 = vxpose.xlu0.b32.cont [11/16] 0.0, 128
    %75 = vxpose.xlu0.b32.cont [12/16] 0.0, 128
    %76 = vxpose.xlu0.b32.cont [13/16] 0.0, 128
    %77 = vxpose.xlu0.b32.cont [14/16] 0.0, 128
    %78 = vxpose.xlu0.b32.cont [15/16] 0.0, 128
    %79 = vxpose.xlu0.b32.end [16/16] 0.0, 128
    %v80 = vpop.trf.xlu0
    %v81 = vpop.trf.xlu0
    %v82 = vpop.trf.xlu0
    %v83 = vpop.trf.xlu0
    %v84 = vpop.trf.xlu0
    %v85 = vpop.trf.xlu0
    %v86 = vpop.trf.xlu0
    %v87 = vpop.trf.xlu0
    %v88 = vpop.trf.xlu0
    %v89 = vpop.trf.xlu0
    %v90 = vpop.trf.xlu0
    %v91 = vpop.trf.xlu0
    %v92 = vpop.trf.xlu0
    %v93 = vpop.trf.xlu0
    %v94 = vpop.trf.xlu0
    %v95 = vpop.trf.xlu0
    %vm96 = vcmask 261120
    %v98 = vsel %vm96, %v80, 0
    %v101 = vsel %vm96, %v81, 0
    %v104 = vsel %vm96, %v82, 0
    %v107 = vsel %vm96, %v83, 0
    %v110 = vsel %vm96, %v84, 0
    %v113 = vsel %vm96, %v85, 0
    %v116 = vsel %vm96, %v86, 0
    %v119 = vsel %vm96, %v87, 0
    %v122 = vsel %vm96, %v88, 0
    %v125 = vsel %vm96, %v89, 0
    %v128 = vsel %vm96, %v90, 0
    %v131 = vsel %vm96, %v91, 0
    %v134 = vsel %vm96, %v92, 0
    %v137 = vsel %vm96, %v93, 0
    %v140 = vsel %vm96, %v94, 0
    %v143 = vsel %vm96, %v95, 0
    %145 = vmatprep.subr.mxu0 0.0
    %146 = vmatpush1.msra.mxu0 0.0
    %147 = vmatprep.subr.mxu0 0.0
    %148 = vmatpush1.msra.mxu0 0.0
    %149 = vmatprep.subr.mxu0 0.0
    %150 = vmatpush1.msra.mxu0 0.0
    %151 = vmatprep.subr.mxu0 0.0
    %152 = vmatpush1.msra.mxu0 0.0
    %153 = vmatprep.subr.mxu0 0.0
    %154 = vmatpush1.msra.mxu0 0.0
    %155 = vmatprep.subr.mxu0 0.0
    %156 = vmatpush1.msra.mxu0 0.0
    %157 = vmatprep.subr.mxu0 0.0
    %158 = vmatpush1.msra.mxu0 0.0
    %159 = vmatprep.subr.mxu0 0.0
    %160 = vmatpush1.msra.mxu0 0.0
    %161 = vmatprep.subr.mxu0 0.0
    %162 = vmatpush1.msra.mxu0 0.0
    %163 = vmatprep.subr.mxu0 0.0
    %164 = vmatpush1.msra.mxu0 0.0
    %165 = vmatprep.subr.mxu0 0.0
    %166 = vmatpush1.msra.mxu0 0.0
    %167 = vmatprep.subr.mxu0 0.0
    %168 = vmatpush1.msra.mxu0 0.0
    %169 = vmatprep.subr.mxu0 0.0
    %170 = vmatpush1.msra.mxu0 %v41
    %171 = vmatprep.subr.mxu0 0.0
    %172 = vmatpush1.msra.mxu0 %v40
    %173 = vmatprep.subr.mxu0 0.0
    %174 = vmatpush1.msra.mxu0 %v39
    %175 = vmatprep.subr.mxu0 0.0
    %176 = vmatpush1.msra.mxu0 %v38
    %177 = vmatprep.subr.mxu0 0.0
    %178 = vmatpush2.msra.mxu0 0.0
    %179 = vmatprep.subr.mxu0 0.0
    %180 = vmatpush2.msra.mxu0 0.0
    %181 = vmatprep.subr.mxu0 0.0
    %182 = vmatpush2.msra.mxu0 0.0
    %183 = vmatprep.subr.mxu0 0.0
    %184 = vmatpush2.msra.mxu0 0.0
    %185 = vmatprep.subr.mxu0 0.0
    %186 = vmatpush2.msra.mxu0 0.0
    %187 = vmatprep.subr.mxu0 0.0
    %188 = vmatpush2.msra.mxu0 0.0
    %189 = vmatprep.subr.mxu0 0.0
    %190 = vmatpush2.msra.mxu0 0.0
    %191 = vmatprep.subr.mxu0 0.0
    %192 = vmatpush2.msra.mxu0 0.0
    %193 = vmatprep.subr.mxu0 0.0
    %194 = vmatpush2.msra.mxu0 0.0
    %195 = vmatprep.subr.mxu0 0.0
    %196 = vmatpush2.msra.mxu0 0.0
    %197 = vmatprep.subr.mxu0 0.0
    %198 = vmatpush2.msra.mxu0 0.0
    %199 = vmatprep.subr.mxu0 0.0
    %200 = vmatpush2.msra.mxu0 0.0
    %201 = vmatprep.subr.mxu0 0.0
    %202 = vmatpush2.msra.mxu0 0.0
    %203 = vmatprep.subr.mxu0 0.0
    %204 = vmatpush2.msra.mxu0 0.0
    %205 = vmatprep.subr.mxu0 0.0
    %206 = vmatpush2.msra.mxu0 0.0
    %207 = vmatprep.subr.mxu0 0.0
    %208 = vmatpush2.msra.mxu0 0.0
    %209 = vmatprep.mubr.f32.mxu0 0.0
    %210 = vmatmul.mubr.f32.gmra.mxu0 %v98
    %v211 = vpop.f32.mrf.mxu0
    %v212 = vadd.f32 0.0, %v211
    %v213 = vpop.f32.mrf.mxu0
    %214 = vmatprep.mubr.f32.mxu0 0.0
    %215 = vmatmul.mubr.f32.gmra.mxu0 %v101
    %v216 = vpop.f32.mrf.mxu0
    %v217 = vadd.f32 0.0, %v216
    %v218 = vpop.f32.mrf.mxu0
    %219 = vmatprep.mubr.f32.mxu0 0.0
    %220 = vmatmul.mubr.f32.gmra.mxu0 %v104
    %v221 = vpop.f32.mrf.mxu0
    %v222 = vadd.f32 0.0, %v221
    %v223 = vpop.f32.mrf.mxu0
    %224 = vmatprep.mubr.f32.mxu0 0.0
    %225 = vmatmul.mubr.f32.gmra.mxu0 %v107
    %v226 = vpop.f32.mrf.mxu0
    %v227 = vadd.f32 0.0, %v226
    %v228 = vpop.f32.mrf.mxu0
    %229 = vmatprep.mubr.f32.mxu0 0.0
    %230 = vmatmul.mubr.f32.gmra.mxu0 %v110
    %v231 = vpop.f32.mrf.mxu0
    %v232 = vadd.f32 0.0, %v231
    %v233 = vpop.f32.mrf.mxu0
    %234 = vmatprep.mubr.f32.mxu0 0.0
    %235 = vmatmul.mubr.f32.gmra.mxu0 %v113
    %v236 = vpop.f32.mrf.mxu0
    %v237 = vadd.f32 0.0, %v236
    %v238 = vpop.f32.mrf.mxu0
    %239 = vmatprep.mubr.f32.mxu0 0.0
    %240 = vmatmul.mubr.f32.gmra.mxu0 %v116
    %v241 = vpop.f32.mrf.mxu0
    %v242 = vadd.f32 0.0, %v241
    %v243 = vpop.f32.mrf.mxu0
    %244 = vmatprep.mubr.f32.mxu0 0.0
    %245 = vmatmul.mubr.f32.gmra.mxu0 %v119
    %v246 = vpop.f32.mrf.mxu0
    %v247 = vadd.f32 0.0, %v246
    %v248 = vpop.f32.mrf.mxu0
    %249 = vmatprep.mubr.f32.mxu0 0.0
    %250 = vmatmul.mubr.f32.gmra.mxu0 %v122
    %v251 = vpop.f32.mrf.mxu0
    %v252 = vadd.f32 0.0, %v251
    %v253 = vpop.f32.mrf.mxu0
    %254 = vmatprep.mubr.f32.mxu0 0.0
    %255 = vmatmul.mubr.f32.gmra.mxu0 %v125
    %v256 = vpop.f32.mrf.mxu0
    %v257 = vadd.f32 0.0, %v256
    %v258 = vpop.f32.mrf.mxu0
    %259 = vmatprep.mubr.f32.mxu0 0.0
    %260 = vmatmul.mubr.f32.gmra.mxu0 %v128
    %v261 = vpop.f32.mrf.mxu0
    %v262 = vadd.f32 0.0, %v261
    %v263 = vpop.f32.mrf.mxu0
    %264 = vmatprep.mubr.f32.mxu0 0.0
    %265 = vmatmul.mubr.f32.gmra.mxu0 %v131
    %v266 = vpop.f32.mrf.mxu0
    %v267 = vadd.f32 0.0, %v266
    %v268 = vpop.f32.mrf.mxu0
    %269 = vmatprep.mubr.f32.mxu0 0.0
    %270 = vmatmul.mubr.f32.gmra.mxu0 %v134
    %v271 = vpop.f32.mrf.mxu0
    %v272 = vadd.f32 0.0, %v271
    %v273 = vpop.f32.mrf.mxu0
    %274 = vmatprep.mubr.f32.mxu0 0.0
    %275 = vmatmul.mubr.f32.gmra.mxu0 %v137
    %v276 = vpop.f32.mrf.mxu0
    %v277 = vadd.f32 0.0, %v276
    %v278 = vpop.f32.mrf.mxu0
    %279 = vmatprep.mubr.f32.mxu0 0.0
    %280 = vmatmul.mubr.f32.gmra.mxu0 %v140
    %v281 = vpop.f32.mrf.mxu0
    %v282 = vadd.f32 0.0, %v281
    %v283 = vpop.f32.mrf.mxu0
    %284 = vmatprep.mubr.f32.mxu0 0.0
    %285 = vmatmul.mubr.f32.gmra.mxu0 %v143
    %v286 = vpop.f32.mrf.mxu0
    %v287 = vadd.f32 0.0, %v286
    %v288 = vpop.f32.mrf.mxu0
    %289 = vdwg.mxu0
    %290 = vst [vmem:[#allocation7] sm:$0xff] %v212
    %291 = vst [vmem:[#allocation7 + $0x8] sm:$0xff] %v217
    %292 = vst [vmem:[#allocation7 + $0x10] sm:$0xff] %v222
    %293 = vst [vmem:[#allocation7 + $0x18] sm:$0xff] %v227
    %294 = vst [vmem:[#allocation7 + $0x20] sm:$0xff] %v232
    %295 = vst [vmem:[#allocation7 + $0x28] sm:$0xff] %v237
    %296 = vst [vmem:[#allocation7 + $0x30] sm:$0xff] %v242
    %297 = vst [vmem:[#allocation7 + $0x38] sm:$0xff] %v247
    %298 = vst [vmem:[#allocation7 + $0x40] sm:$0xff] %v252
    %299 = vst [vmem:[#allocation7 + $0x48] sm:$0xff] %v257
    %300 = vst [vmem:[#allocation7 + $0x50] sm:$0xff] %v262
    %301 = vst [vmem:[#allocation7 + $0x58] sm:$0xff] %v267
    %302 = vst [vmem:[#allocation7 + $0x60] sm:$0xff] %v272
    %303 = vst [vmem:[#allocation7 + $0x68] sm:$0xff] %v277
    %304 = vst [vmem:[#allocation7 + $0x70] sm:$0xff] %v282
    %305 = vst [vmem:[#allocation7 + $0x78] sm:$0xff] %v287
    // Predicated region
    $region18: #{tpu_custom_call.1} parent=1 // pred_check
      _
    $region19: #{tpu_custom_call.1} parent=1 // pred_check_branch
      %307 = sbr.rel (0) target = $region21
    $region20: #{tpu_custom_call.1} parent=1 // pred_region
      %s309 = ssub.s32 2048, 2048
      %310 = vsyncadd [#allocation4], %s309
      %s311 = sshll.u32 [#allocation7], 4
      %s312 = int_to_ptr.vmem [resolvable:$true] %s311
      %317 = dma.vmem_to_hbm [thread:$0]  %s312, 2048, %s2, [#allocation4], 128, 128, 8
    $region21: #{tpu_custom_call.1} parent=1 // pred_fallthru
      _
    // Predicated region
    $region22: #{tpu_custom_call.1} parent=1 // pred_check
      _
    $region23: #{tpu_custom_call.1} parent=1 // pred_check_branch
      %319 = sbr.rel (0) target = $region25
    $region24: #{tpu_custom_call.1} parent=1 // pred_region
      %320 = dma.done [#allocation4], 2048
    $region25: #{tpu_custom_call.1} parent=1 // pred_fallthru
      _
    %321 = vsyncpa [#allocation3], 1
    %322 = vsyncpa [#allocation6], 1
    %323 = vsyncpa [#allocation4], 1

</llo_original>
